<compile_context>
chip_gen: v7x
topology: tpu7x:2x2x1
jax: 0.10.0
libtpu: 0.0.40
codegen_flags: <defaults>
</compile_context>

<pallas_src>
import jax
import jax.numpy as jnp
from jax.experimental import pallas as pl
from jax.experimental.pallas import tpu as pltpu


def _h_swish_kernel(x_ref, o_ref):
    x = x_ref[...]
    # h_sigmoid(x) = relu6(x + 3) / 6 ; weak python scalars keep x's dtype (bf16-safe).
    hs = jnp.clip(x + 3.0, 0.0, 6.0) * (1.0 / 6.0)
    o_ref[...] = (x * hs).astype(o_ref.dtype)


def _h_swish_jnp(x):
    # Tiny-tail / tiny-tensor path (pure jnp, same math as the kernel).
    return x * (jnp.clip(x + 3.0, 0.0, 6.0) * (1.0 / 6.0))


_LANE_WIDTHS = (1024, 512, 256, 128)  # lane-dense candidates (multiples of 128)


def _default_block_bytes():
    """Pick a block size tuned to the TPU generation's HBM bandwidth / VMEM budget."""
    try:
        kind = jax.devices()[0].device_kind.lower()
    except Exception:
        return 4 << 20
    if "v5" in kind:                      # v5e/v5: 16 MiB scoped VMEM default -> stay small
        return 2 << 20
    if "v7" in kind or "tpu7" in kind:    # v7x: 3.2 TB/s HBM -> bigger blocks win
        return 8 << 20
    return 4 << 20                        # v6e and other chips


def _h_swish_2d(x2, block_bytes, donate_input):
    """Run the elementwise kernel on a lane-dense (rows, cols) view, cols % 128 == 0."""
    rows, cols = x2.shape
    dtype = x2.dtype
    itemsize = jnp.dtype(dtype).itemsize

    # Block rows sized for ~block_bytes; keep sublane dim packing-aligned
    # (8 for f32, 16 for bf16, 32 for 8-bit) unless the block spans the whole array.
    sublane = max(8, 32 // itemsize)
    tr = max(1, block_bytes // (cols * itemsize))
    if tr >= rows:
        tr = rows
    else:
        tr = max(sublane, (tr // sublane) * sublane)

    grid = (pl.cdiv(rows, tr),)
    n = rows * cols

    cost = pl.CostEstimate(
        flops=5 * n,
        transcendentals=0,
        bytes_accessed=2 * n * itemsize,
    )

    # Double-buffered input + output = 4 blocks; add headroom, cap under v7x's 64 MiB.
    block_nbytes = tr * cols * itemsize
    vmem_limit = min(4 * block_nbytes + (8 << 20), 48 << 20)

    return pl.pallas_call(
        _h_swish_kernel,
        out_shape=jax.ShapeDtypeStruct((rows, cols), dtype),
        grid_spec=pltpu.PrefetchScalarGridSpec(
            num_scalar_prefetch=0,
            grid=grid,
            in_specs=[pl.BlockSpec((tr, cols), lambda i: (i, 0))],
            out_specs=pl.BlockSpec((tr, cols), lambda i: (i, 0)),
        ),
        compiler_params=pltpu.CompilerParams(
            dimension_semantics=("parallel",),
            vmem_limit_bytes=vmem_limit,
        ),
        cost_estimate=cost,
        input_output_aliases=({0: 0} if donate_input else {}),
    )(x2)


def h_swish(x, *, block_bytes=None, donate_input=False):
    """Elementwise h_swish (x * relu6(x+3)/6). Any shape/dtype; lane-dense tiled on TPU.

    donate_input=True aliases the (reshaped) input buffer into the output; callers that
    also donate `x` at the jit level must not reuse `x` afterwards.
    """
    orig_shape = x.shape
    n = x.size
    if n == 0:
        return x
    if block_bytes is None:
        block_bytes = _default_block_bytes()

    # Tiny tensor: not worth a kernel launch, and can't form a 128-lane view.
    if n < 128:
        return _h_swish_jnp(x)

    flat = x.reshape(-1)

    # Fast path: widest lane width that divides the element count -> no padding, no tail.
    cols = next((c for c in _LANE_WIDTHS if n % c == 0), None)
    if cols is not None:
        out2 = _h_swish_2d(flat.reshape(-1, cols), block_bytes, donate_input)
        return out2.reshape(orig_shape)

    # Awkward size: kernel on the 128-aligned prefix, plain jnp on the <128-element tail.
    # (No jnp.pad of the full tensor and no trailing full-tensor slice.)
    n128 = (n // 128) * 128
    prefix = _h_swish_2d(flat[:n128].reshape(-1, 128), block_bytes, False).reshape(-1)
    tail = _h_swish_jnp(flat[n128:])
    return jnp.concatenate([prefix, tail]).reshape(orig_shape)


def h_swish_ref(x):
    return x * (jnp.clip(x + 3.0, 0.0, 6.0) / 6.0)


if __name__ == "__main__":
    key = jax.random.PRNGKey(0)
    k0, k1, k2, k3 = jax.random.split(key, 4)

    # NCHW input consistent with the module's usage (conv activations).
    x = jax.random.normal(k0, (2, 4, 16, 16), dtype=jnp.float32) * 4.0
    out = h_swish(x)
    jax.block_until_ready(out)
    assert out.shape == x.shape and out.dtype == x.dtype
    assert jnp.allclose(out, h_swish_ref(x), atol=1e-6, rtol=1e-6)

    # Awkward size (not a multiple of 128) -> exercises the prefix + tail path.
    x_odd = jax.random.normal(k1, (3, 5, 7, 11), dtype=jnp.float32) * 4.0
    out_odd = h_swish(x_odd)
    jax.block_until_ready(out_odd)
    assert out_odd.shape == x_odd.shape and out_odd.dtype == x_odd.dtype
    assert jnp.allclose(out_odd, h_swish_ref(x_odd), atol=1e-6, rtol=1e-6)

    # Tiny tensor (< 128 elements) -> pure-jnp path.
    x_tiny = jax.random.normal(k3, (5,), dtype=jnp.float32) * 4.0
    out_tiny = h_swish(x_tiny)
    jax.block_until_ready(out_tiny)
    assert jnp.allclose(out_tiny, h_swish_ref(x_tiny), atol=1e-6, rtol=1e-6)

    # bf16 input: arithmetic stays in bf16 (halves HBM traffic).
    x_bf = (jax.random.normal(k2, (2, 4, 16, 16), dtype=jnp.float32) * 4.0
            ).astype(jnp.bfloat16)
    out_bf = h_swish(x_bf)
    jax.block_until_ready(out_bf)
    assert out_bf.shape == x_bf.shape and out_bf.dtype == jnp.bfloat16
    assert jnp.allclose(out_bf.astype(jnp.float32),
                        h_swish_ref(x_bf.astype(jnp.float32)),
                        atol=5e-2, rtol=5e-2)

    print("KERNEL_OK")
</pallas_src>

<mosaic_0001>
module attributes {stable_mosaic.version = 11 : i64} {
  func.func @_h_swish_kernel(%arg0: i32, %arg1: memref<2x1024xf32, #tpu.memory_space<vmem>>, %arg2: memref<2x1024xf32, #tpu.memory_space<vmem>>) attributes {dimension_semantics = [#tpu.dimension_semantics<parallel>], iteration_bounds = array<i64: 1>, scalar_prefetch = 0 : i64, scratch_operands = 0 : i64, tpu.core_type = #tpu.core_type<tc>, window_params = [{transform_indices = @transform_0, window_bounds = array<i64: 2, 1024>}, {transform_indices = @transform_1, window_bounds = array<i64: 2, 1024>}]} {
    %c0 = arith.constant 0 : index
    %c0_0 = arith.constant 0 : index
    %0 = vector.load %arg1[%c0, %c0_0] : memref<2x1024xf32, #tpu.memory_space<vmem>>, vector<2x1024xf32>
    %cst = arith.constant 3.000000e+00 : f32
    %1 = vector.broadcast %cst : f32 to vector<2x1024xf32>
    %2 = arith.addf %0, %1 : vector<2x1024xf32>
    %cst_1 = arith.constant 0.000000e+00 : f32
    %cst_2 = arith.constant 6.000000e+00 : f32
    %3 = vector.broadcast %cst_1 : f32 to vector<2x1024xf32>
    %4 = arith.maximumf %3, %2 : vector<2x1024xf32>
    %5 = vector.broadcast %cst_2 : f32 to vector<2x1024xf32>
    %6 = arith.minimumf %5, %4 : vector<2x1024xf32>
    %cst_3 = arith.constant 0.166666672 : f32
    %7 = vector.broadcast %cst_3 : f32 to vector<2x1024xf32>
    %8 = arith.mulf %6, %7 : vector<2x1024xf32>
    %9 = arith.mulf %0, %8 : vector<2x1024xf32>
    %c0_4 = arith.constant 0 : index
    %c0_5 = arith.constant 0 : index
    %10 = vector.load %arg2[%c0_4, %c0_5] : memref<2x1024xf32, #tpu.memory_space<vmem>>, vector<2x1024xf32>
    tpu.vector_store %arg2[%c0_4, %c0_5], %9 {strides = array<i32>} : memref<2x1024xf32, #tpu.memory_space<vmem>>, vector<2x1024xf32>,
    return
  }
  func.func @transform_0(%arg0: i32) -> (i32, i32) {
    %c0_i32 = arith.constant 0 : i32
    %c0_i32_0 = arith.constant 0 : i32
    return %arg0, %c0_i32 : i32, i32
  }
  func.func @transform_1(%arg0: i32) -> (i32, i32) {
    %c0_i32 = arith.constant 0 : i32
    %c0_i32_0 = arith.constant 0 : i32
    return %arg0, %c0_i32 : i32, i32
  }
}

</mosaic_0001>

<llo_original>
// kernel: tpu_custom_call.1
$region0: #{tpu_custom_call.1}
  #allocation0 [shape = 'u32[]', space=smem, size = 0x4, offset = 0x4, fixed_abs, tag = 'smem constant byte address 0x4 - core index']
  #allocation1 [shape = 'u32[144,128]{1,0:T(1,128)}', space=vmem, size = 0x12000, scoped, tag = 'internal scratch']
  %s0 = inlined_call_operand.hbm [shape: f32[2,1024], index: 0, kind: input, shape index: {}]
  %s1 = inlined_call_operand.hbm [shape: f32[2,1024], index: 1, kind: output, shape index: {}]
  %s2 = sld [smem:[#allocation0]]
  $region18: #{tpu_custom_call.1} parent=0
    _
  %s4 = ssub.s32 1, %s2
  %s5 = scalar_select 0, %s4, %s2
  $region1: #{tpu_custom_call.1} parent=0
    #allocation2 [shape = 'u8[8192]{0}', space=vmem, size = 0x2000, scoped, tag = 'input window, operand 0, single buffered']
    #allocation3 [shape = 's32[1]{0}', space=sflag, size = 0x4, scoped, tag = 'scoped memory for tpu_custom_call.1']
    #allocation4 [shape = 's32[1]{0}', space=sflag, size = 0x4, scoped, tag = 'scoped memory for tpu_custom_call.1']
    #allocation5 [shape = 'u8[8192]{0}', space=vmem, size = 0x2000, scoped, tag = 'output window, operand 0, single buffered']
    %6 = vsyncpa [#allocation3], 0
    %7 = vsyncpa [#allocation4], 0
    // Predicated region
    $region2: #{tpu_custom_call.1} parent=1 // pred_check
      _
    $region3: #{tpu_custom_call.1} parent=1 // pred_check_branch
      %9 = sbr.rel (0) target = $region5
    $region4: #{tpu_custom_call.1} parent=1 // pred_region
      %s11 = ssub.s32 256, 256
      %12 = vsyncadd [#allocation3], %s11
      %s14 = sshll.u32 [#allocation2], 4
      %s15 = int_to_ptr.vmem [resolvable:$true] %s14
      %17 = dma.hbm_to_vmem [thread:$0]  %s0, 256, %s15, [#allocation3]
    $region5: #{tpu_custom_call.1} parent=1 // pred_fallthru
      _
    // Predicated region
    $region6: #{tpu_custom_call.1} parent=1 // pred_check
      _
    $region7: #{tpu_custom_call.1} parent=1 // pred_check_branch
      %19 = sbr.rel (0) target = $region9
    $region8: #{tpu_custom_call.1} parent=1 // pred_region
      %20 = dma.done [#allocation3], 256
    $region9: #{tpu_custom_call.1} parent=1 // pred_fallthru
      _
    %v21 = vld [vmem:[#allocation2] sm:$0xff]
    %v22 = vld [vmem:[#allocation2 + $0x8] sm:$0xff]
    %v23 = vadd.f32 %v21, 3.0
    %v24 = vadd.f32 %v22, 3.0
    %v25 = vmax.f32 %v23, 0.0
    %v26 = vmax.f32 %v24, 0.0
    %v27 = vmin.f32 %v25, 6.0
    %v28 = vmin.f32 %v26, 6.0
    %v29 = vmul.f32 %v27, 0.16666667
    %v30 = vmul.f32 %v28, 0.16666667
    %v31 = vmul.f32 %v21, %v29
    %v32 = vmul.f32 %v22, %v30
    %33 = vst [vmem:[#allocation5] sm:$0xff] %v31
    %34 = vst [vmem:[#allocation5 + $0x8] sm:$0xff] %v32
    // Predicated region
    $region10: #{tpu_custom_call.1} parent=1 // pred_check
      _
    $region11: #{tpu_custom_call.1} parent=1 // pred_check_branch
      %36 = sbr.rel (0) target = $region13
    $region12: #{tpu_custom_call.1} parent=1 // pred_region
      %s38 = ssub.s32 256, 256
      %39 = vsyncadd [#allocation4], %s38
      %s41 = sshll.u32 [#allocation5], 4
      %s42 = int_to_ptr.vmem [resolvable:$true] %s41
      %44 = dma.vmem_to_hbm [thread:$0]  %s42, 256, %s1, [#allocation4]
    $region13: #{tpu_custom_call.1} parent=1 // pred_fallthru
      _
    // Predicated region
    $region14: #{tpu_custom_call.1} parent=1 // pred_check
      _
    $region15: #{tpu_custom_call.1} parent=1 // pred_check_branch
      %46 = sbr.rel (0) target = $region17
    $region16: #{tpu_custom_call.1} parent=1 // pred_region
      %47 = dma.done [#allocation4], 256
    $region17: #{tpu_custom_call.1} parent=1 // pred_fallthru
      _
    %48 = vsyncpa [#allocation3], 1
    %49 = vsyncpa [#allocation4], 1

</llo_original>
